<compile_context>
chip_gen: v5e
topology: v5e:2x2
jax: 0.10.0
libtpu: 0.0.40
codegen_flags: <defaults>
</compile_context>

<pallas_src>
import jax
import jax.numpy as jnp
from jax.experimental import pallas as pl
from jax.experimental.pallas import tpu as pltpu


def _sublane_multiple(dtype) -> int:
    # sublane packing factor: 8 for 32-bit, 16 for 16-bit, 32 for 8-bit dtypes
    return {4: 8, 2: 16, 1: 32}.get(jnp.dtype(dtype).itemsize, 8)


def _per_joint_mse_kernel(pred_ref, tgt_ref, mask_ref, out_ref):
    # pred_ref / tgt_ref : (bc, J, thw)     mask_ref : (bc, 1, thw)
    # out_ref            : (1, 2, bc, J)    [0]=sum(diff^2), [1]=sum(diff^2*mask)
    # out block is resident across the hw ("arbitrary") grid axis -> accumulator.
    @pl.when(pl.program_id(1) == 0)
    def _():
        out_ref[...] = jnp.zeros_like(out_ref)

    diff = pred_ref[...].astype(jnp.float32) - tgt_ref[...].astype(jnp.float32)
    sq = diff * diff                                   # (bc, J, thw)  VPU
    mask = mask_ref[...].astype(jnp.float32)           # (bc, 1, thw)  sublane-broadcast
    out_ref[0, 0] += jnp.sum(sq, axis=-1)              # (bc, J)  XLU lane reduce
    out_ref[0, 1] += jnp.sum(sq * mask, axis=-1)       # (bc, J)


def per_joint_mse_loss(output, target, gt_mask,
                       use_target_weight=False, target_weight=None,
                       block_bytes_budget=4 << 20):
    B, J, H, W = output.shape
    HW = H * W
    itemsize = jnp.dtype(output.dtype).itemsize

    # ---- wrapper glue: layout + nearest-neighbour 2x downsample (strided slice),
    #      mask kept in its NATIVE dtype (kernel casts to f32) ----
    mask_ds = gt_mask[:, 0, ::2, ::2].reshape(B, 1, HW)
    pred = output.reshape(B, J, HW)
    tgt = target.reshape(B, J, HW)

    # ---- block sizing against a VMEM budget, accounting for sublane padding of J ----
    sub = _sublane_multiple(output.dtype)
    j_pad = -(-J // sub) * sub                           # padded sublane extent of J
    mask_itemsize = jnp.dtype(mask_ds.dtype).itemsize
    mask_sub = _sublane_multiple(mask_ds.dtype)

    per_batch_full = j_pad * HW * itemsize               # padded footprint of 1 batch of pred/tgt

    if per_batch_full <= block_bytes_budget:
        # Full HW per step; fuse as many batches as fit the budget.
        thw = HW                                         # == full dim -> no 128 constraint
        bc = max(1, min(B, block_bytes_budget // per_batch_full))
        if B >= 2:
            bc = min(bc, -(-B // 2))                     # nblk >= 2: both v7x TCs get work
    else:
        # Large heatmaps: tile HW (lane axis) in multiples of 128, accumulate over hw axis.
        bc = 1
        thw = max(128, (block_bytes_budget // (j_pad * itemsize)) // 128 * 128)
        thw = min(thw, -(-HW // 128) * 128)

    nblk = -(-B // bc)
    n_hw = -(-HW // thw)
    B_pad = nblk * bc
    HW_pad = n_hw * thw

    # Zero-pad: padded rows/lanes have pred == target == 0 -> contribute exactly 0
    # to both partial sums (we never rely on undefined out-of-bounds block contents).
    if B_pad != B or HW_pad != HW:
        pred = jnp.pad(pred, ((0, B_pad - B), (0, 0), (0, HW_pad - HW)))
        tgt = jnp.pad(tgt, ((0, B_pad - B), (0, 0), (0, HW_pad - HW)))
        mask_ds = jnp.pad(mask_ds, ((0, B_pad - B), (0, 0), (0, HW_pad - HW)))

    # ---- explicit VMEM limit derived from the padded block footprints ----
    block_in_bytes = bc * j_pad * thw * itemsize                     # pred / tgt block (padded)
    mask_block_bytes = bc * mask_sub * thw * mask_itemsize           # (bc,1,thw) pads to mask_sub sublanes
    out_block_bytes = 2 * (-(-bc // 8) * 8) * (-(-J // 128) * 128) * 4
    vmem_needed = 2 * (2 * block_in_bytes + mask_block_bytes + out_block_bytes)
    # Clamp to <=48 MiB: safe headroom on v7x (64 MiB physical) and well under v5e/v6e (128 MiB).
    vmem_limit = int(min(48 << 20, max(vmem_needed + (8 << 20), 32 << 20)))

    cost = pl.CostEstimate(
        flops=5 * B_pad * J * HW_pad,
        transcendentals=0,
        bytes_accessed=(2 * B_pad * J * HW_pad * itemsize
                        + B_pad * HW_pad * mask_itemsize
                        + nblk * 2 * bc * J * 4),
    )

    sums = pl.pallas_call(
        _per_joint_mse_kernel,
        out_shape=jax.ShapeDtypeStruct((nblk, 2, bc, J), jnp.float32),
        grid_spec=pltpu.PrefetchScalarGridSpec(
            num_scalar_prefetch=0,
            grid=(nblk, n_hw),                                   # reduction (hw) axis last
            in_specs=[
                pl.BlockSpec((bc, J, thw), lambda i, h: (i, 0, h)),   # pred
                pl.BlockSpec((bc, J, thw), lambda i, h: (i, 0, h)),   # target
                pl.BlockSpec((bc, 1, thw), lambda i, h: (i, 0, h)),   # mask (1/J the traffic)
            ],
            out_specs=pl.BlockSpec((1, 2, bc, J), lambda i, h: (i, 0, 0, 0)),
        ),
        compiler_params=pltpu.CompilerParams(
            dimension_semantics=("parallel", "arbitrary"),
            vmem_limit_bytes=vmem_limit),
        cost_estimate=cost,
    )(pred, tgt, mask_ds)

    # (nblk, 2, bc, J) -> (B, 2, J); drop zero-padded batches
    sums = sums.transpose(0, 2, 1, 3).reshape(B_pad, 2, J)[:B]
    ssq = sums[:, 0, :]          # per-(batch, joint) sum of diff^2
    ssqm = sums[:, 1, :]         # per-(batch, joint) sum of diff^2 * mask

    n = float(B * J * H * W)
    if use_target_weight:
        # mul(pred, w) vs mul(gt, w)  =>  w^2 * diff^2 ; weight applies to loss_global only
        w = jnp.reshape(target_weight, (B, J)).astype(jnp.float32)
        loss_global = jnp.sum(w * w * ssq) / n
    else:
        loss_global = jnp.sum(ssq) / n
    # chained .mean(dim=3)...mean(dim=0) over uniform dims == overall mean
    loss_attention = jnp.sum(ssqm) / n
    return 0.1 * loss_global + 0.9 * loss_attention


if __name__ == "__main__":
    key = jax.random.PRNGKey(0)
    k1, k2, k3, k4 = jax.random.split(key, 4)

    B, J, H, W = 2, 4, 16, 16
    output = jax.random.normal(k1, (B, J, H, W), jnp.float32)
    target = jax.random.normal(k2, (B, J, H, W), jnp.float32)
    gt_mask = (jax.random.uniform(k3, (B, 1, 2 * H, 2 * W)) > 0.5).astype(jnp.float32)
    target_weight = jax.random.uniform(k4, (B, J, 1), jnp.float32)

    def ref_loss(out, tgt, gm, use_w=False, w=None):
        # pure-JAX reference (same nearest-neighbour top-left downsample as F.interpolate)
        m = gm[:, 0:1, ::2, ::2].astype(jnp.float32)
        d = out.astype(jnp.float32) - tgt.astype(jnp.float32)
        la = jnp.mean(d ** 2 * jnp.broadcast_to(m, out.shape))
        if use_w:
            wv = jnp.reshape(w, (out.shape[0], out.shape[1], 1, 1)).astype(jnp.float32)
            lg = jnp.mean((d * wv) ** 2)
        else:
            lg = jnp.mean(d ** 2)
        return 0.1 * lg + 0.9 * la

    # --- default path (use_target_weight=False) ---
    loss = jax.block_until_ready(per_joint_mse_loss(output, target, gt_mask))
    assert jnp.allclose(loss, ref_loss(output, target, gt_mask), rtol=1e-5, atol=1e-6), loss

    # --- weighted path (use_target_weight=True) ---
    loss_w = jax.block_until_ready(
        per_joint_mse_loss(output, target, gt_mask,
                           use_target_weight=True, target_weight=target_weight))
    assert jnp.allclose(loss_w, ref_loss(output, target, gt_mask, True, target_weight),
                        rtol=1e-5, atol=1e-6), loss_w

    # --- odd batch (exercises zero-padding of B) with bf16 inputs (half HBM traffic) ---
    B3 = 3
    o3 = jax.random.normal(k1, (B3, J, H, W), jnp.bfloat16)
    t3 = jax.random.normal(k2, (B3, J, H, W), jnp.bfloat16)
    g3 = (jax.random.uniform(k3, (B3, 1, 2 * H, 2 * W)) > 0.5).astype(jnp.float32)
    l3 = jax.block_until_ready(per_joint_mse_loss(o3, t3, g3))
    assert jnp.allclose(l3, ref_loss(o3, t3, g3), rtol=1e-4, atol=1e-5), l3

    # --- tiny budget forces the HW-tiling / in-VMEM accumulation path ---
    l_tiled = jax.block_until_ready(
        per_joint_mse_loss(output, target, gt_mask, block_bytes_budget=4 << 10))
    assert jnp.allclose(l_tiled, ref_loss(output, target, gt_mask),
                        rtol=1e-5, atol=1e-6), l_tiled

    print("KERNEL_OK")
</pallas_src>

<mosaic_0001>
module attributes {stable_mosaic.version = 11 : i64} {
  func.func @_per_joint_mse_kernel(%arg0: i32, %arg1: i32, %arg2: memref<1x4x256xf32, #tpu.memory_space<vmem>>, %arg3: memref<1x4x256xf32, #tpu.memory_space<vmem>>, %arg4: memref<1x1x256xf32, #tpu.memory_space<vmem>>, %arg5: memref<1x2x1x4xf32, #tpu.memory_space<vmem>>) attributes {dimension_semantics = [#tpu.dimension_semantics<parallel>, #tpu.dimension_semantics<arbitrary>], iteration_bounds = array<i64: 2, 1>, scalar_prefetch = 0 : i64, scratch_operands = 0 : i64, tpu.core_type = #tpu.core_type<tc>, window_params = [{transform_indices = @transform_0, window_bounds = array<i64: 1, 4, 256>}, {transform_indices = @transform_1, window_bounds = array<i64: 1, 4, 256>}, {transform_indices = @transform_2, window_bounds = array<i64: 1, 1, 256>}, {transform_indices = @transform_3, window_bounds = array<i64: 1, 2, 1, 4>}]} {
    %c0_i32 = arith.constant 0 : i32
    %0 = arith.cmpi eq, %arg1, %c0_i32 : i32
    %1 = arith.extui %0 : i1 to i32
    %c0_i32_0 = arith.constant 0 : i32
    %2 = arith.cmpi ne, %1, %c0_i32_0 : i32
    scf.if %2 {
      %cst_25 = arith.constant 0.000000e+00 : f32
      %24 = vector.broadcast %cst_25 : f32 to vector<1x2x1x4xf32>
      %c0_26 = arith.constant 0 : index
      %c0_27 = arith.constant 0 : index
      %c0_28 = arith.constant 0 : index
      %c0_29 = arith.constant 0 : index
      %25 = vector.load %arg5[%c0_26, %c0_27, %c0_28, %c0_29] : memref<1x2x1x4xf32, #tpu.memory_space<vmem>>, vector<1x2x1x4xf32>
      tpu.vector_store %arg5[%c0_26, %c0_27, %c0_28, %c0_29], %24 {strides = array<i32>} : memref<1x2x1x4xf32, #tpu.memory_space<vmem>>, vector<1x2x1x4xf32>,
    } else {
    }
    %c0 = arith.constant 0 : index
    %c0_1 = arith.constant 0 : index
    %c0_2 = arith.constant 0 : index
    %3 = vector.load %arg2[%c0, %c0_1, %c0_2] : memref<1x4x256xf32, #tpu.memory_space<vmem>>, vector<1x4x256xf32>
    %c0_3 = arith.constant 0 : index
    %c0_4 = arith.constant 0 : index
    %c0_5 = arith.constant 0 : index
    %4 = vector.load %arg3[%c0_3, %c0_4, %c0_5] : memref<1x4x256xf32, #tpu.memory_space<vmem>>, vector<1x4x256xf32>
    %5 = arith.subf %3, %4 : vector<1x4x256xf32>
    %6 = arith.mulf %5, %5 : vector<1x4x256xf32>
    %c0_6 = arith.constant 0 : index
    %c0_7 = arith.constant 0 : index
    %c0_8 = arith.constant 0 : index
    %7 = vector.load %arg4[%c0_6, %c0_7, %c0_8] : memref<1x1x256xf32, #tpu.memory_space<vmem>>, vector<1x1x256xf32>
    %c0_9 = arith.constant 0 : index
    %c0_10 = arith.constant 0 : index
    %c0_11 = arith.constant 0 : index
    %c0_12 = arith.constant 0 : index
    %8 = vector.load %arg5[%c0_9, %c0_10, %c0_11, %c0_12] : memref<1x2x1x4xf32, #tpu.memory_space<vmem>>, vector<1x1x1x4xf32>
    %9 = vector.shape_cast %8 : vector<1x1x1x4xf32> to vector<1x4xf32>
    %cst = arith.constant dense<0.000000e+00> : vector<1x4xf32>
    %10 = vector.multi_reduction <add>, %6, %cst [2] : vector<1x4x256xf32> to vector<1x4xf32>
    %11 = arith.addf %9, %10 : vector<1x4xf32>
    %c0_13 = arith.constant 0 : index
    %c0_14 = arith.constant 0 : index
    %c0_15 = arith.constant 0 : index
    %c0_16 = arith.constant 0 : index
    %12 = vector.load %arg5[%c0_13, %c0_14, %c0_15, %c0_16] : memref<1x2x1x4xf32, #tpu.memory_space<vmem>>, vector<1x1x1x4xf32>
    %13 = vector.shape_cast %12 : vector<1x1x1x4xf32> to vector<1x4xf32>
    %14 = vector.shape_cast %11 : vector<1x4xf32> to vector<1x1x1x4xf32>
    tpu.vector_store %arg5[%c0_13, %c0_14, %c0_15, %c0_16], %14 {strides = array<i32>} : memref<1x2x1x4xf32, #tpu.memory_space<vmem>>, vector<1x1x1x4xf32>,
    %c0_17 = arith.constant 0 : index
    %c1 = arith.constant 1 : index
    %c0_18 = arith.constant 0 : index
    %c0_19 = arith.constant 0 : index
    %15 = vector.load %arg5[%c0_17, %c1, %c0_18, %c0_19] : memref<1x2x1x4xf32, #tpu.memory_space<vmem>>, vector<1x1x1x4xf32>
    %16 = vector.shape_cast %15 : vector<1x1x1x4xf32> to vector<1x4xf32>
    %17 = vector.broadcast %7 : vector<1x1x256xf32> to vector<1x4x256xf32>
    %18 = arith.mulf %6, %17 : vector<1x4x256xf32>
    %cst_20 = arith.constant dense<0.000000e+00> : vector<1x4xf32>
    %19 = vector.multi_reduction <add>, %18, %cst_20 [2] : vector<1x4x256xf32> to vector<1x4xf32>
    %20 = arith.addf %16, %19 : vector<1x4xf32>
    %c0_21 = arith.constant 0 : index
    %c1_22 = arith.constant 1 : index
    %c0_23 = arith.constant 0 : index
    %c0_24 = arith.constant 0 : index
    %21 = vector.load %arg5[%c0_21, %c1_22, %c0_23, %c0_24] : memref<1x2x1x4xf32, #tpu.memory_space<vmem>>, vector<1x1x1x4xf32>
    %22 = vector.shape_cast %21 : vector<1x1x1x4xf32> to vector<1x4xf32>
    %23 = vector.shape_cast %20 : vector<1x4xf32> to vector<1x1x1x4xf32>
    tpu.vector_store %arg5[%c0_21, %c1_22, %c0_23, %c0_24], %23 {strides = array<i32>} : memref<1x2x1x4xf32, #tpu.memory_space<vmem>>, vector<1x1x1x4xf32>,
    return
  }
  func.func @transform_0(%arg0: i32, %arg1: i32) -> (i32, i32, i32) {
    %c0_i32 = arith.constant 0 : i32
    %c0_i32_0 = arith.constant 0 : i32
    return %arg0, %c0_i32, %arg1 : i32, i32, i32
  }
  func.func @transform_1(%arg0: i32, %arg1: i32) -> (i32, i32, i32) {
    %c0_i32 = arith.constant 0 : i32
    %c0_i32_0 = arith.constant 0 : i32
    return %arg0, %c0_i32, %arg1 : i32, i32, i32
  }
  func.func @transform_2(%arg0: i32, %arg1: i32) -> (i32, i32, i32) {
    %c0_i32 = arith.constant 0 : i32
    %c0_i32_0 = arith.constant 0 : i32
    return %arg0, %c0_i32, %arg1 : i32, i32, i32
  }
  func.func @transform_3(%arg0: i32, %arg1: i32) -> (i32, i32, i32, i32) {
    %c0_i32 = arith.constant 0 : i32
    %c0_i32_0 = arith.constant 0 : i32
    %c0_i32_1 = arith.constant 0 : i32
    %c0_i32_2 = arith.constant 0 : i32
    return %arg0, %c0_i32, %c0_i32_0, %c0_i32_1 : i32, i32, i32, i32
  }
}

</mosaic_0001>

<llo_original>
// kernel: tpu_custom_call.1
$region0: #{tpu_custom_call.1}
  #allocation0 [shape = 'u32[]', space=smem, size = 0x4, offset = 0x4, fixed_abs, tag = 'smem constant byte address 0x4 - core index']
  #allocation1 [shape = 'u32[72,128]{1,0:T(1,128)}', space=vmem, size = 0x9000, scoped, tag = 'internal scratch']
  %s0 = inlined_call_operand.hbm [shape: f32[2,4,256], index: 0, kind: input, shape index: {}]
  %s1 = inlined_call_operand.hbm [shape: f32[2,4,256], index: 1, kind: input, shape index: {}]
  %s2 = inlined_call_operand.hbm [shape: f32[2,1,256], index: 2, kind: input, shape index: {}]
  %s3 = inlined_call_operand.hbm [shape: f32[2,2,1,4], index: 3, kind: output, shape index: {}]
  %s4 = sld [smem:[#allocation0]]
  $region61: #{tpu_custom_call.1} parent=0
    _
  %s6 = ssub.s32 1, %s4
  %s7 = scalar_select 0, %s6, %s4
  $region1: #{tpu_custom_call.1} parent=0
    #allocation2 [shape = 'u8[8192]{0}', space=vmem, size = 0x2000, scoped, tag = 'input window, operand 0']
    #allocation3 [shape = 's32[2]{0}', space=sflag, size = 0x8, scoped, tag = 'scoped memory for tpu_custom_call.1']
    #allocation4 [shape = 's32[2]{0}', space=sflag, size = 0x8, scoped, tag = 'scoped memory for tpu_custom_call.1']
    #allocation5 [shape = 'u8[8192]{0}', space=vmem, size = 0x2000, scoped, tag = 'input window, operand 1']
    #allocation6 [shape = 's32[2]{0}', space=sflag, size = 0x8, scoped, tag = 'scoped memory for tpu_custom_call.1']
    #allocation7 [shape = 'u8[2048]{0}', space=vmem, size = 0x800, scoped, tag = 'input window, operand 2']
    #allocation8 [shape = 'u8[2048]{0}', space=vmem, size = 0x800, scoped, tag = 'output window, operand 0']
    %8 = vsyncpa [#allocation3], 0
    %s9 = scalar_lea.sflag [#allocation3], 1
    %10 = vsyncpa %s9, 0
    %11 = vsyncpa [#allocation6], 0
    %s12 = scalar_lea.sflag [#allocation6], 1
    %13 = vsyncpa %s12, 0
    %14 = vsyncpa [#allocation4], 0
    %s15 = scalar_lea.sflag [#allocation4], 1
    %16 = vsyncpa %s15, 0
    loop: start=0, step=1, limit=4
    $region2: #{tpu_custom_call.1} parent=1 // loop_pre_header
      _
    $region3: #{tpu_custom_call.1} parent=1 // loop_header
      %s18 = sphi 0, %s22
      %p19 = scmp.ge.s32.totalorder %s18, 4
      %s25 = sphi 0, %s37
      %s26 = sphi 0, %s33
      %s27 = sphi 0, %s25
      %s28 = sphi 0, %s26
      %s29 = sphi 0, %s27
      %s30 = sphi 0, %s28
      %s42 = sphi 0, %s44
      %s45 = sphi 0, %s42
      %s46 = sphi 0, %s45
      %s62 = sphi 0, %s46
      %s70 = sphi 0, %s72
      %s73 = sphi 0, %s70
      %s74 = sphi 0, %s73
      %s90 = sphi 0, %s74
      %s98 = sphi 0, %s100
      %s101 = sphi 0, %s98
      %s102 = sphi 0, %s101
      %s118 = sphi 0, %s102
      %s124 = sphi 0, %s126
      %s127 = sphi 0, %s124
      %s128 = sphi 0, %s127
      %s144 = sphi 0, %s128
    $region4: #{tpu_custom_call.1} parent=1 // loop_header_branch
      %21 = sbr.rel (%p19) target = $region8
    $region5: #{tpu_custom_call.1} parent=1 // loop_body
      %s23 = ssub.s32 %s18, 1
      %s24 = ssub.s32 %s18, 2
      %s31 = sadd.s32 1, %s26
      %p32 = scmp.ge.s32.totalorder %s31, 1
      %s33 = scalar_select %p32, 0, %s31
      %s34 = sadd.s32 1, %s25
      %s35 = scalar_select %p32, %s34, %s25
      %p36 = scmp.ge.s32.totalorder %s35, 2
      %s37 = scalar_select %p36, 0, %s35
      %s38 = ssub.s32 %s25, %s37
      %s39 = ssub.s32 %s26, %s33
      %s40 = sor.u32 %s38, %s39
      %p41 = scmp.eq.s32.totalorder %s40, 0
      %s43 = sadd.s32 %s42, 1
      %s44 = scalar_select %p41, %s42, %s43
      %p47 = pneg %p41
      %p48 = scmp.eq.s32.totalorder %s18, 1
      %p49 = por %p47, %p48
      %p50 = scmp.ne.s32.totalorder %s42, %s45
      %p51 = scmp.eq.s32.totalorder %s18, 0
      %p52 = por %p50, %p51
      %p53 = scmp.ne.s32.totalorder %s42, %s45
      %p54 = scmp.eq.s32.totalorder %s23, 1
      %p55 = por %p53, %p54
      %p56 = scmp.ne.s32.totalorder %s45, %s46
      %p57 = scmp.eq.s32.totalorder %s23, 0
      %p58 = por %p56, %p57
      %p59 = scmp.ne.s32.totalorder %s45, %s46
      %p60 = scmp.eq.s32.totalorder %s24, 1
      %p61 = por %p59, %p60
      %p63 = scmp.ne.s32.totalorder %s46, %s62
      %p64 = scmp.eq.s32.totalorder %s24, 0
      %p65 = por %p63, %p64
      %s66 = ssub.s32 %s25, %s37
      %s67 = ssub.s32 %s26, %s33
      %s68 = sor.u32 %s66, %s67
      %p69 = scmp.eq.s32.totalorder %s68, 0
      %s71 = sadd.s32 %s70, 1
      %s72 = scalar_select %p69, %s70, %s71
      %p75 = pneg %p69
      %p76 = scmp.eq.s32.totalorder %s18, 1
      %p77 = por %p75, %p76
      %p78 = scmp.ne.s32.totalorder %s70, %s73
      %p79 = scmp.eq.s32.totalorder %s18, 0
      %p80 = por %p78, %p79
      %p81 = scmp.ne.s32.totalorder %s70, %s73
      %p82 = scmp.eq.s32.totalorder %s23, 1
      %p83 = por %p81, %p82
      %p84 = scmp.ne.s32.totalorder %s73, %s74
      %p85 = scmp.eq.s32.totalorder %s23, 0
      %p86 = por %p84, %p85
      %p87 = scmp.ne.s32.totalorder %s73, %s74
      %p88 = scmp.eq.s32.totalorder %s24, 1
      %p89 = por %p87, %p88
      %p91 = scmp.ne.s32.totalorder %s74, %s90
      %p92 = scmp.eq.s32.totalorder %s24, 0
      %p93 = por %p91, %p92
      %s94 = ssub.s32 %s25, %s37
      %s95 = ssub.s32 %s26, %s33
      %s96 = sor.u32 %s94, %s95
      %p97 = scmp.eq.s32.totalorder %s96, 0
      %s99 = sadd.s32 %s98, 1
      %s100 = scalar_select %p97, %s98, %s99
      %p103 = pneg %p97
      %p104 = scmp.eq.s32.totalorder %s18, 1
      %p105 = por %p103, %p104
      %p106 = scmp.ne.s32.totalorder %s98, %s101
      %p107 = scmp.eq.s32.totalorder %s18, 0
      %p108 = por %p106, %p107
      %p109 = scmp.ne.s32.totalorder %s98, %s101
      %p110 = scmp.eq.s32.totalorder %s23, 1
      %p111 = por %p109, %p110
      %p112 = scmp.ne.s32.totalorder %s101, %s102
      %p113 = scmp.eq.s32.totalorder %s23, 0
      %p114 = por %p112, %p113
      %p115 = scmp.ne.s32.totalorder %s101, %s102
      %p116 = scmp.eq.s32.totalorder %s24, 1
      %p117 = por %p115, %p116
      %p119 = scmp.ne.s32.totalorder %s102, %s118
      %p120 = scmp.eq.s32.totalorder %s24, 0
      %p121 = por %p119, %p120
      %s122 = ssub.s32 %s25, %s37
      %p123 = scmp.eq.s32.totalorder %s122, 0
      %s125 = sadd.s32 %s124, 1
      %s126 = scalar_select %p123, %s124, %s125
      %p129 = pneg %p123
      %p130 = scmp.eq.s32.totalorder %s18, 1
      %p131 = por %p129, %p130
      %p132 = scmp.ne.s32.totalorder %s124, %s127
      %p133 = scmp.eq.s32.totalorder %s18, 0
      %p134 = por %p132, %p133
      %p135 = scmp.ne.s32.totalorder %s124, %s127
      %p136 = scmp.eq.s32.totalorder %s23, 1
      %p137 = por %p135, %p136
      %p138 = scmp.ne.s32.totalorder %s127, %s128
      %p139 = scmp.eq.s32.totalorder %s23, 0
      %p140 = por %p138, %p139
      %p141 = scmp.ne.s32.totalorder %s127, %s128
      %p142 = scmp.eq.s32.totalorder %s24, 1
      %p143 = por %p141, %p142
      %p145 = scmp.ne.s32.totalorder %s128, %s144
      %p146 = scmp.eq.s32.totalorder %s24, 0
      %p147 = por %p145, %p146
      %p148 = scmp.le.s32.totalorder 1, %s18
      %p149 = scmp.lt.s32.totalorder %s18, 3
      %p150 = pnand %p148, %p149
      %p151 = pneg %p150
      // Predicated region
      $region9: #{tpu_custom_call.1} parent=5 // pred_check
        _
      $region10: #{tpu_custom_call.1} parent=5 // pred_check_branch
        %153 = sbr.rel (%p150) target = $region12
      $region11: #{tpu_custom_call.1} parent=5 // pred_region
        %s154 = ssub.s32 %s18, 1
      $region12: #{tpu_custom_call.1} parent=5 // pred_fallthru
        _
      %p155 = scmp.lt.s32.totalorder %s18, 2
      // Predicated region
      $region13: #{tpu_custom_call.1} parent=5 // pred_check
        %p156 = pneg %p155
      $region14: #{tpu_custom_call.1} parent=5 // pred_check_branch
        %158 = sbr.rel (%p156) target = $region16
      $region15: #{tpu_custom_call.1} parent=5 // pred_region
        // Predicated region
        $region17: #{tpu_custom_call.1} parent=15 // pred_check
          %p159 = pneg %p52
        $region18: #{tpu_custom_call.1} parent=15 // pred_check_branch
          %161 = sbr.rel (%p159) target = $region20
        $region19: #{tpu_custom_call.1} parent=15 // pred_region
          %s162 = sand.u32 %s42, 1
          %s163 = scalar_lea.sflag [#allocation3], %s162
          %s164 = sand.u32 %s42, 1
          %s165 = smul.addr %s164, 8
          %s166 = scalar_lea.vmem [#allocation2], %s165
          %s167 = smul.u32 2, %s26
          %169 = vsyncadd %s163, 0
          %s170 = smul.addr %s25, 2
          %s171 = sadd.s32 %s167, %s170
          %s172 = smul.addr %s171, 4
          %s173 = scalar_lea.hbm %s0, %s172
          %s175 = sshll.u32 %s173, 4
          %s176 = int_to_ptr.hbm [resolvable:$true] %s175
          %s177 = sshll.u32 %s166, 4
          %s178 = int_to_ptr.vmem [resolvable:$true] %s177
          %180 = dma.hbm_to_vmem [thread:$0]  %s176, 128, %s178, %s163
        $region20: #{tpu_custom_call.1} parent=15 // pred_fallthru
          _
        // Predicated region
        $region21: #{tpu_custom_call.1} parent=15 // pred_check
          %p181 = pneg %p80
        $region22: #{tpu_custom_call.1} parent=15 // pred_check_branch
          %183 = sbr.rel (%p181) target = $region24
        $region23: #{tpu_custom_call.1} parent=15 // pred_region
          %s184 = sand.u32 %s18, 1
          %s185 = scalar_lea.sflag [#allocation6], %s184
          %s186 = sand.u32 %s70, 1
          %s187 = smul.addr %s186, 8
          %s188 = scalar_lea.vmem [#allocation5], %s187
          %s189 = smul.u32 2, %s26
          %191 = vsyncadd %s185, 0
          %s192 = smul.addr %s25, 2
          %s193 = sadd.s32 %s189, %s192
          %s194 = smul.addr %s193, 4
          %s195 = scalar_lea.hbm %s1, %s194
          %s197 = sshll.u32 %s195, 4
          %s198 = int_to_ptr.hbm [resolvable:$true] %s197
          %s199 = sshll.u32 %s188, 4
          %s200 = int_to_ptr.vmem [resolvable:$true] %s199
          %202 = dma.hbm_to_vmem [thread:$0]  %s198, 128, %s200, %s185
        $region24: #{tpu_custom_call.1} parent=15 // pred_fallthru
          _
        // Predicated region
        $region25: #{tpu_custom_call.1} parent=15 // pred_check
          %p203 = pneg %p108
        $region26: #{tpu_custom_call.1} parent=15 // pred_check_branch
          %205 = sbr.rel (%p203) target = $region28
        $region27: #{tpu_custom_call.1} parent=15 // pred_region
          %s206 = sand.u32 %s18, 1
          %s207 = scalar_lea.sflag [#allocation6], %s206
          %s208 = sand.u32 %s98, 1
          %s209 = smul.addr %s208, 2
          %s210 = scalar_lea.vmem [#allocation7], %s209
          %s211 = smul.u32 2, %s26
          %213 = vsyncadd %s207, 0
          %s214 = smul.addr %s25, 2
          %s215 = sadd.s32 %s211, %s214
          %s216 = scalar_lea.hbm %s2, %s215
          %s218 = sshll.u32 %s216, 4
          %s219 = int_to_ptr.hbm [resolvable:$true] %s218
          %s220 = sshll.u32 %s210, 4
          %s221 = int_to_ptr.vmem [resolvable:$true] %s220
          %223 = dma.hbm_to_vmem [thread:$0]  %s219, 32, %s221, %s207
        $region28: #{tpu_custom_call.1} parent=15 // pred_fallthru
          _
      $region16: #{tpu_custom_call.1} parent=5 // pred_fallthru
        _
      %p224 = scmp.le.s32.totalorder 1, %s18
      %p225 = scmp.lt.s32.totalorder %s18, 3
      %p226 = pnand %p224, %p225
      %p227 = pneg %p226
      // Predicated region
      $region29: #{tpu_custom_call.1} parent=5 // pred_check
        _
      $region30: #{tpu_custom_call.1} parent=5 // pred_check_branch
        %229 = sbr.rel (%p226) target = $region32
      $region31: #{tpu_custom_call.1} parent=5 // pred_region
        %s230 = ssub.s32 %s18, 1
        %s231 = sand.u32 %s45, 1
        %s232 = scalar_lea.sflag [#allocation3], %s231
        %s233 = sand.u32 %s45, 1
        %s234 = smul.addr %s233, 8
        %s235 = scalar_lea.vmem [#allocation2], %s234
        // Predicated region
        $region33: #{tpu_custom_call.1} parent=31 // pred_check
          %p236 = pneg %p58
        $region34: #{tpu_custom_call.1} parent=31 // pred_check_branch
          %238 = sbr.rel (%p236) target = $region36
        $region35: #{tpu_custom_call.1} parent=31 // pred_region
          %240 = dma.done %s232, 128
        $region36: #{tpu_custom_call.1} parent=31 // pred_fallthru
          _
        %s241 = sand.u32 %s23, 1
        %s242 = scalar_lea.sflag [#allocation6], %s241
        %s243 = sand.u32 %s73, 1
        %s244 = smul.addr %s243, 8
        %s245 = scalar_lea.vmem [#allocation5], %s244
        // Predicated region
        $region37: #{tpu_custom_call.1} parent=31 // pred_check
          %p246 = pneg %p86
        $region38: #{tpu_custom_call.1} parent=31 // pred_check_branch
          %248 = sbr.rel (%p246) target = $region40
        $region39: #{tpu_custom_call.1} parent=31 // pred_region
          %250 = dma.done %s242, 128
        $region40: #{tpu_custom_call.1} parent=31 // pred_fallthru
          _
        %s251 = sand.u32 %s23, 1
        %s252 = scalar_lea.sflag [#allocation6], %s251
        %s253 = sand.u32 %s101, 1
        %s254 = smul.addr %s253, 2
        %s255 = scalar_lea.vmem [#allocation7], %s254
        // Predicated region
        $region41: #{tpu_custom_call.1} parent=31 // pred_check
          %p256 = pneg %p114
        $region42: #{tpu_custom_call.1} parent=31 // pred_check_branch
          %258 = sbr.rel (%p256) target = $region44
        $region43: #{tpu_custom_call.1} parent=31 // pred_region
          %260 = dma.done %s252, 32
        $region44: #{tpu_custom_call.1} parent=31 // pred_fallthru
          _
        %s261 = sand.u32 %s45, 1
        %s262 = scalar_lea.sflag [#allocation3], %s261
        %s263 = sand.u32 %s45, 1
        %s264 = smul.addr %s263, 8
        %s265 = scalar_lea.vmem [#allocation2], %s264
        %p266 = pneg %p58
        %p267 = pneg %p55
        %s268 = sand.u32 %s23, 1
        %s269 = scalar_lea.sflag [#allocation6], %s268
        %s270 = sand.u32 %s73, 1
        %s271 = smul.addr %s270, 8
        %s272 = scalar_lea.vmem [#allocation5], %s271
        %p273 = pneg %p86
        %p274 = pneg %p83
        %s275 = sand.u32 %s23, 1
        %s276 = scalar_lea.sflag [#allocation6], %s275
        %s277 = sand.u32 %s101, 1
        %s278 = smul.addr %s277, 2
        %s279 = scalar_lea.vmem [#allocation7], %s278
        %p280 = pneg %p114
        %p281 = pneg %p111
        %p282 = pneg %p140
        %p283 = pneg %p137
        %s284 = sand.u32 %s127, 1
        %s285 = scalar_lea.sflag [#allocation4], %s284
        %s286 = sand.u32 %s127, 1
        %s287 = smul.addr %s286, 2
        %s288 = scalar_lea.vmem [#allocation8], %s287
        %s289 = smul.u32 2, %s28
        %s290 = smul.u32 2, %s28
        %s291 = smul.u32 2, %s28
        %p292 = scmp.eq.s32.totalorder %s28, 0
        // Predicated region
        $region45: #{tpu_custom_call.1} parent=31 // pred_check
          %p293 = pneg %p292
        $region46: #{tpu_custom_call.1} parent=31 // pred_check_branch
          %295 = sbr.rel (%p293) target = $region48
        $region47: #{tpu_custom_call.1} parent=31 // pred_region
          %vm296 = vcmask 24576
          %297 = vst.msk [vmem:[%s288] sm:$0x1] %vm296, 0.0
          %298 = vst.msk [vmem:[%s288 + $0x1] sm:$0x1] %vm296, 0.0
        $region48: #{tpu_custom_call.1} parent=31 // pred_fallthru
          _
        %v299 = vld [vmem:[%s235] sm:$0xff]
        %v300 = vld [vmem:[%s245] sm:$0xff]
        %v301 = vsub.f32 %v299, %v300
        %v302 = vmul.f32 %v301, %v301
        %v303 = vld [vmem:[%s255] sm:$0x3]
        %v304 = vld [vmem:[%s288] sm:$0x1]
        %306 = vst [vmem:[#allocation1] ss:$2 sm:$0xff] %v302
        %v307 = vld.sshfl [vmem:[#allocation1] sm:$0xff pattern:$0x75316420]
        %v308 = vld.sshfl [vmem:[#allocation1 + $0x8] sm:$0xff pattern:$0x75316420]
        %vm311 = vcmask 1043456
        %v312 = vsel %vm311, %v307, 0.0
        %v313 = vsel %vm311, %v308, 0.0
        %v314 = vadd.f32 %v312, %v313
        %315 = vadd.xlane.f32.xlu0 %v314
        %v316 = vpop.xlane.xlu0 %315
        %v318 = vperm.slane %v316, 0
        %v319 = vperm.slane %v316, 1
        %v320 = vperm.slane %v316, 2
        %v321 = vperm.slane %v316, 3
        %322 = vst [vmem:[#allocation1] ss:$9 sm:$0xff] %v318
        %s323 = scalar_lea.vmem [#allocation1], 1
        %324 = vst [vmem:[%s323] ss:$9 sm:$0xff] %v319
        %s325 = scalar_lea.vmem [#allocation1], 2
        %326 = vst [vmem:[%s325] ss:$9 sm:$0xff] %v320
        %s327 = scalar_lea.vmem [#allocation1], 3
        %328 = vst [vmem:[%s327] ss:$9 sm:$0xff] %v321
        %v329 = vld [vmem:[#allocation1] sm:$0xff]
        %330 = vset.pattern.permute.xlu0 0
        %331 = vperm.xlu0 %330, %v329
        %v332 = vpop.permute.xlu0 %331
        %v333 = vlaneseq
        %v334 = vand.u32 %v333, 127
        %v335 = vperm.slane %v332, %v334
        %v337 = vadd.f32 %v304, %v335
        %vm338 = vcmask 24576
        %339 = vst.msk [vmem:[%s288] sm:$0x1] %vm338, %v337
        %s340 = scalar_lea.vmem %s288, 1 [#allocation8]
        %v341 = vld [vmem:[%s340] sm:$0x1]
        %v343 = vperm.slane %v303, 0
        %v344 = vperm.slane %v303, 1
        %v345 = vrot.slane %v344, 4
        %v346 = vsel %vm311, %v343, %v345
        %v348 = vmul.f32 %v302, %v346
        %350 = vst [vmem:[#allocation1] ss:$2 sm:$0xff] %v348
        %v351 = vld.sshfl [vmem:[#allocation1] sm:$0xff pattern:$0x75316420]
        %v352 = vld.sshfl [vmem:[#allocation1 + $0x8] sm:$0xff pattern:$0x75316420]
        %v355 = vsel %vm311, %v351, 0.0
        %v356 = vsel %vm311, %v352, 0.0
        %v357 = vadd.f32 %v355, %v356
        %358 = vadd.xlane.f32.xlu0 %v357
        %v359 = vpop.xlane.xlu0 %358
        %v361 = vperm.slane %v359, 0
        %v362 = vperm.slane %v359, 1
        %v363 = vperm.slane %v359, 2
        %v364 = vperm.slane %v359, 3
        %365 = vst [vmem:[#allocation1] ss:$9 sm:$0xff] %v361
        %s366 = scalar_lea.vmem [#allocation1], 1
        %367 = vst [vmem:[%s366] ss:$9 sm:$0xff] %v362
        %s368 = scalar_lea.vmem [#allocation1], 2
        %369 = vst [vmem:[%s368] ss:$9 sm:$0xff] %v363
        %s370 = scalar_lea.vmem [#allocation1], 3
        %371 = vst [vmem:[%s370] ss:$9 sm:$0xff] %v364
        %v372 = vld [vmem:[#allocation1] sm:$0xff]
        %373 = vset.pattern.permute.xlu0 0
        %374 = vperm.xlu0 %373, %v372
        %v375 = vpop.permute.xlu0 %374
        %v376 = vperm.slane %v375, %v334
        %v378 = vadd.f32 %v341, %v376
        %379 = vst.msk [vmem:[%s340] sm:$0x1] %vm338, %v378
        %s380 = sand.u32 %s127, 1
        %s381 = scalar_lea.sflag [#allocation4], %s380
        %s382 = sand.u32 %s127, 1
        %s383 = smul.addr %s382, 2
        %s384 = scalar_lea.vmem [#allocation8], %s383
        // Predicated region
        $region49: #{tpu_custom_call.1} parent=31 // pred_check
          %p385 = pneg %p137
        $region50: #{tpu_custom_call.1} parent=31 // pred_check_branch
          %387 = sbr.rel (%p385) target = $region52
        $region51: #{tpu_custom_call.1} parent=31 // pred_region
          %389 = vsyncadd %s381, 0
          %s390 = smul.addr %s27, 2
          %s391 = scalar_lea.hbm %s3, %s390
          %s392 = sshll.u32 %s384, 4
          %s393 = int_to_ptr.vmem [resolvable:$true] %s392
          %s394 = sshll.u32 %s391, 4
          %s395 = int_to_ptr.hbm [resolvable:$true] %s394
          %400 = dma.vmem_to_hbm [thread:$0]  %s393, 32, %s395, %s381, 16, 16, 1
        $region52: #{tpu_custom_call.1} parent=31 // pred_fallthru
          _
      $region32: #{tpu_custom_call.1} parent=5 // pred_fallthru
        _
      %p401 = scmp.le.s32.totalorder 2, %s18
      // Predicated region
      $region53: #{tpu_custom_call.1} parent=5 // pred_check
        %p402 = pneg %p401
      $region54: #{tpu_custom_call.1} parent=5 // pred_check_branch
        %404 = sbr.rel (%p402) target = $region56
      $region55: #{tpu_custom_call.1} parent=5 // pred_region
        %s405 = ssub.s32 %s18, 2
        // Predicated region
        $region57: #{tpu_custom_call.1} parent=55 // pred_check
          %p406 = pneg %p143
        $region58: #{tpu_custom_call.1} parent=55 // pred_check_branch
          %408 = sbr.rel (%p406) target = $region60
        $region59: #{tpu_custom_call.1} parent=55 // pred_region
          %s409 = sand.u32 %s128, 1
          %s410 = scalar_lea.sflag [#allocation4], %s409
          %s411 = sand.u32 %s128, 1
          %s412 = smul.addr %s411, 2
          %s413 = scalar_lea.vmem [#allocation8], %s412
          %415 = dma.done %s410, 32
        $region60: #{tpu_custom_call.1} parent=55 // pred_fallthru
          _
      $region56: #{tpu_custom_call.1} parent=5 // pred_fallthru
        _
    $region6: #{tpu_custom_call.1} parent=1 // loop_footer
      %s22 = sadd.s32 1, %s18
    $region7: #{tpu_custom_call.1} parent=1 // loop_footer_branch
      %17 = sbr.rel target = $region3
    $region8: #{tpu_custom_call.1} parent=1 // loop_exit
      _
    %416 = vsyncpa [#allocation3], 1
    %s417 = scalar_lea.sflag [#allocation3], 1
    %418 = vsyncpa %s417, 1
    %419 = vsyncpa [#allocation6], 1
    %s420 = scalar_lea.sflag [#allocation6], 1
    %421 = vsyncpa %s420, 1
    %422 = vsyncpa [#allocation4], 1
    %s423 = scalar_lea.sflag [#allocation4], 1
    %424 = vsyncpa %s423, 1

</llo_original>
